<compile_context>
chip_gen: v6e
topology: v6e:2x2x1
jax: 0.10.0
libtpu: 0.0.40
codegen_flags: <defaults>
</compile_context>

<pallas_src>
import jax
import jax.numpy as jnp
from jax.experimental import pallas as pl
from jax.experimental.pallas import tpu as pltpu


def value_kernel(xt_ref, w1_ref, b1_ref, w2_ref, b2_ref, w3_ref, b3_ref, o_ref):
    # xt_ref: (S, TB)   batch on lanes
    # w1_ref: (H, S), b1_ref: (H, 1)
    # w2_ref: (H, H), b2_ref: (H, 1)
    # w3_ref: (H, 1), b3_ref: (1, 1) in SMEM
    # o_ref : (1, TB)   lane-dense value row
    xt = xt_ref[...].astype(jnp.bfloat16)

    # fc1 + ReLU  (MXU bf16 operands, f32 accumulate; bias/ReLU on VPU in f32)
    h1 = jnp.dot(w1_ref[...].astype(jnp.bfloat16), xt,
                 preferred_element_type=jnp.float32) + b1_ref[...]
    h1 = jnp.maximum(h1, 0.0)

    # fc2 + ReLU
    h2 = jnp.dot(w2_ref[...].astype(jnp.bfloat16), h1.astype(jnp.bfloat16),
                 preferred_element_type=jnp.float32) + b2_ref[...]
    h2 = jnp.maximum(h2, 0.0)

    # fc3: N=1 head as VPU multiply + sublane (XLU) reduce -> lane-dense (1, TB) row.
    out = jnp.sum(h2 * w3_ref[...], axis=0, keepdims=True) + b3_ref[0, 0]
    o_ref[...] = out.astype(o_ref.dtype)


def value_forward(x, params, *, block_batch=512):
    """x: (batch, state_size) f32. Returns (batch, 1) f32 (PyTorch Value.forward)."""
    w1t, b1c, w2t, b2c, w3c, b3 = params
    batch, state_size = x.shape
    hidden = w1t.shape[0]

    # Lane-dense batch tile; pad batch up to a multiple of the tile.
    tb = min(block_batch, pl.cdiv(batch, 128) * 128)
    padded = pl.cdiv(batch, tb) * tb
    if padded != batch:
        x = jnp.pad(x, ((0, padded - batch), (0, 0)))
    xt = x.T  # (state_size, padded): batch on the lane axis

    num_tiles = padded // tb
    flops = 2 * padded * (state_size * hidden + hidden * hidden + hidden)
    bytes_accessed = 4 * (padded * state_size + padded
                          + hidden * state_size + hidden * hidden + 3 * hidden + 1)

    out = pl.pallas_call(
        value_kernel,
        out_shape=jax.ShapeDtypeStruct((1, padded), jnp.float32),
        grid=(num_tiles,),
        in_specs=[
            pl.BlockSpec((state_size, tb), lambda i: (0, i)),      # x.T batch tile
            pl.BlockSpec((hidden, state_size), lambda i: (0, 0)),  # w1 (resident)
            pl.BlockSpec((hidden, 1), lambda i: (0, 0)),           # b1 (resident)
            pl.BlockSpec((hidden, hidden), lambda i: (0, 0)),      # w2 (resident)
            pl.BlockSpec((hidden, 1), lambda i: (0, 0)),           # b2 (resident)
            pl.BlockSpec((hidden, 1), lambda i: (0, 0)),           # w3 (resident)
            pl.BlockSpec(memory_space=pltpu.MemorySpace.SMEM),     # b3 scalar
        ],
        out_specs=pl.BlockSpec((1, tb), lambda i: (0, i)),
        compiler_params=pltpu.CompilerParams(
            dimension_semantics=("parallel",)),
        cost_estimate=pl.CostEstimate(
            flops=flops, transcendentals=0, bytes_accessed=bytes_accessed),
    )(xt, w1t, b1c, w2t, b2c, w3c, b3)

    return out[0, :batch].reshape(batch, 1)


def init_value_params(key, state_size, hidden=128):
    # PyTorch nn.Linear default init: U(-1/sqrt(fan_in), 1/sqrt(fan_in)).
    # Weights are stored exactly like PyTorch: (out_features, in_features).
    ks = jax.random.split(key, 6)

    def uniform(k, shape, fan_in):
        bound = float(fan_in) ** -0.5
        return jax.random.uniform(k, shape, jnp.float32, -bound, bound)

    w1t = uniform(ks[0], (hidden, state_size), state_size)   # fc1.weight
    b1c = uniform(ks[1], (hidden, 1), state_size)            # fc1.bias (column)
    w2t = uniform(ks[2], (hidden, hidden), hidden)           # fc2.weight
    b2c = uniform(ks[3], (hidden, 1), hidden)                # fc2.bias (column)
    w3c = uniform(ks[4], (hidden, 1), hidden)                # fc3.weight (as column)
    b3 = uniform(ks[5], (1, 1), hidden)                      # fc3.bias
    return (w1t, b1c, w2t, b2c, w3c, b3)


if __name__ == "__main__":
    key = jax.random.PRNGKey(0)
    kx, kp = jax.random.split(key)

    batch = 8          # small demo batch
    state_size = 32    # stand-in for env.observation_space.shape[0]
    hidden = 128

    x = jax.random.normal(kx, (batch, state_size), jnp.float32)
    params = init_value_params(kp, state_size, hidden)

    out = jax.block_until_ready(value_forward(x, params))
    assert out.shape == (batch, 1)

    w1t, b1c, w2t, b2c, w3c, b3 = params

    # Reference emulating the kernel math (bf16 MXU operands, f32 accumulation).
    h1 = jnp.maximum(
        jnp.dot(x.astype(jnp.bfloat16), w1t.T.astype(jnp.bfloat16),
                preferred_element_type=jnp.float32) + b1c.T, 0.0)
    h2 = jnp.maximum(
        jnp.dot(h1.astype(jnp.bfloat16), w2t.T.astype(jnp.bfloat16),
                preferred_element_type=jnp.float32) + b2c.T, 0.0)
    ref_bf16 = jnp.sum(h2 * w3c.T, axis=-1, keepdims=True) + b3
    assert jnp.allclose(out, ref_bf16, atol=1e-3, rtol=1e-3), \
        float(jnp.max(jnp.abs(out - ref_bf16)))

    # Loose parity check against the pure-f32 PyTorch-equivalent math.
    h1f = jnp.maximum(x @ w1t.T + b1c.T, 0.0)
    h2f = jnp.maximum(h1f @ w2t.T + b2c.T, 0.0)
    ref_f32 = h2f @ w3c + b3
    assert jnp.allclose(out, ref_f32, atol=5e-2, rtol=5e-2)

    print("KERNEL_OK")
</pallas_src>

<mosaic_0001>
module attributes {stable_mosaic.version = 11 : i64} {
  func.func @value_kernel(%arg0: i32, %arg1: memref<32x128xf32, #tpu.memory_space<vmem>>, %arg2: memref<128x32xf32, #tpu.memory_space<vmem>>, %arg3: memref<128x1xf32, #tpu.memory_space<vmem>>, %arg4: memref<128x128xf32, #tpu.memory_space<vmem>>, %arg5: memref<128x1xf32, #tpu.memory_space<vmem>>, %arg6: memref<128x1xf32, #tpu.memory_space<vmem>>, %arg7: memref<1x1xf32, #tpu.memory_space<smem>>, %arg8: memref<1x128xf32, #tpu.memory_space<vmem>>) attributes {dimension_semantics = [#tpu.dimension_semantics<parallel>], iteration_bounds = array<i64: 1>, scalar_prefetch = 0 : i64, scratch_operands = 0 : i64, tpu.core_type = #tpu.core_type<tc>, window_params = [{transform_indices = @transform_0, window_bounds = array<i64: 32, 128>}, {pipeline_mode = #tpu.pipeline_mode<synchronous>, transform_indices = @transform_1, window_bounds = array<i64: 128, 32>}, {pipeline_mode = #tpu.pipeline_mode<synchronous>, transform_indices = @transform_2, window_bounds = array<i64: 128, 1>}, {pipeline_mode = #tpu.pipeline_mode<synchronous>, transform_indices = @transform_3, window_bounds = array<i64: 128, 128>}, {pipeline_mode = #tpu.pipeline_mode<synchronous>, transform_indices = @transform_4, window_bounds = array<i64: 128, 1>}, {pipeline_mode = #tpu.pipeline_mode<synchronous>, transform_indices = @transform_5, window_bounds = array<i64: 128, 1>}, {transform_indices = @transform_6, window_bounds = array<i64: 1, 1>}, {transform_indices = @transform_7, window_bounds = array<i64: 1, 128>}]} {
    %c0 = arith.constant 0 : index
    %c0_0 = arith.constant 0 : index
    %0 = vector.load %arg1[%c0, %c0_0] : memref<32x128xf32, #tpu.memory_space<vmem>>, vector<32x128xf32>
    %1 = arith.truncf %0 : vector<32x128xf32> to vector<32x128xbf16>
    %c0_1 = arith.constant 0 : index
    %c0_2 = arith.constant 0 : index
    %2 = vector.load %arg2[%c0_1, %c0_2] : memref<128x32xf32, #tpu.memory_space<vmem>>, vector<128x32xf32>
    %3 = arith.truncf %2 : vector<128x32xf32> to vector<128x32xbf16>
    %cst = arith.constant dense<0.000000e+00> : vector<128x128xf32>
    %4 = tpu.matmul %3, %1, %cst {dimension_numbers = #tpu.dot_dimension_numbers<[1], [0], [0], [1], [0, 0, 1, 1], [], []>} : vector<128x32xbf16>, vector<32x128xbf16>, vector<128x128xf32> -> vector<128x128xf32>
    %c0_3 = arith.constant 0 : index
    %c0_4 = arith.constant 0 : index
    %5 = vector.load %arg3[%c0_3, %c0_4] : memref<128x1xf32, #tpu.memory_space<vmem>>, vector<128x1xf32>
    %6 = vector.broadcast %5 : vector<128x1xf32> to vector<128x128xf32>
    %7 = arith.addf %4, %6 : vector<128x128xf32>
    %cst_5 = arith.constant 0.000000e+00 : f32
    %8 = vector.broadcast %cst_5 : f32 to vector<128x128xf32>
    %9 = arith.maximumf %7, %8 : vector<128x128xf32>
    %c0_6 = arith.constant 0 : index
    %c0_7 = arith.constant 0 : index
    %10 = vector.load %arg4[%c0_6, %c0_7] : memref<128x128xf32, #tpu.memory_space<vmem>>, vector<128x128xf32>
    %11 = arith.truncf %10 : vector<128x128xf32> to vector<128x128xbf16>
    %12 = arith.truncf %9 : vector<128x128xf32> to vector<128x128xbf16>
    %cst_8 = arith.constant dense<0.000000e+00> : vector<128x128xf32>
    %13 = tpu.matmul %11, %12, %cst_8 {dimension_numbers = #tpu.dot_dimension_numbers<[1], [0], [0], [1], [0, 0, 1, 1], [], []>} : vector<128x128xbf16>, vector<128x128xbf16>, vector<128x128xf32> -> vector<128x128xf32>
    %c0_9 = arith.constant 0 : index
    %c0_10 = arith.constant 0 : index
    %14 = vector.load %arg5[%c0_9, %c0_10] : memref<128x1xf32, #tpu.memory_space<vmem>>, vector<128x1xf32>
    %15 = vector.broadcast %14 : vector<128x1xf32> to vector<128x128xf32>
    %16 = arith.addf %13, %15 : vector<128x128xf32>
    %cst_11 = arith.constant 0.000000e+00 : f32
    %17 = vector.broadcast %cst_11 : f32 to vector<128x128xf32>
    %18 = arith.maximumf %16, %17 : vector<128x128xf32>
    %c0_12 = arith.constant 0 : index
    %c0_13 = arith.constant 0 : index
    %19 = vector.load %arg6[%c0_12, %c0_13] : memref<128x1xf32, #tpu.memory_space<vmem>>, vector<128x1xf32>
    %20 = vector.broadcast %19 : vector<128x1xf32> to vector<128x128xf32>
    %21 = arith.mulf %18, %20 : vector<128x128xf32>
    %cst_14 = arith.constant dense<0.000000e+00> : vector<128xf32>
    %22 = vector.multi_reduction <add>, %21, %cst_14 [0] : vector<128x128xf32> to vector<128xf32>
    %23 = vector.shape_cast %22 : vector<128xf32> to vector<1x128xf32>
    %c0_15 = arith.constant 0 : index
    %c0_16 = arith.constant 0 : index
    %24 = memref.load %arg7[%c0_15, %c0_16] : memref<1x1xf32, #tpu.memory_space<smem>>
    %25 = vector.broadcast %24 : f32 to vector<1x128xf32>
    %26 = arith.addf %23, %25 : vector<1x128xf32>
    %c0_17 = arith.constant 0 : index
    %c0_18 = arith.constant 0 : index
    %27 = vector.load %arg8[%c0_17, %c0_18] : memref<1x128xf32, #tpu.memory_space<vmem>>, vector<1x128xf32>
    tpu.vector_store %arg8[%c0_17, %c0_18], %26 {strides = array<i32>} : memref<1x128xf32, #tpu.memory_space<vmem>>, vector<1x128xf32>,
    return
  }
  func.func @transform_0(%arg0: i32) -> (i32, i32) {
    %c0_i32 = arith.constant 0 : i32
    %c0_i32_0 = arith.constant 0 : i32
    return %c0_i32, %arg0 : i32, i32
  }
  func.func @transform_1(%arg0: i32) -> (i32, i32) {
    %c0_i32 = arith.constant 0 : i32
    %c0_i32_0 = arith.constant 0 : i32
    %c0_i32_1 = arith.constant 0 : i32
    return %c0_i32, %c0_i32_0 : i32, i32
  }
  func.func @transform_2(%arg0: i32) -> (i32, i32) {
    %c0_i32 = arith.constant 0 : i32
    %c0_i32_0 = arith.constant 0 : i32
    %c0_i32_1 = arith.constant 0 : i32
    return %c0_i32, %c0_i32_0 : i32, i32
  }
  func.func @transform_3(%arg0: i32) -> (i32, i32) {
    %c0_i32 = arith.constant 0 : i32
    %c0_i32_0 = arith.constant 0 : i32
    %c0_i32_1 = arith.constant 0 : i32
    return %c0_i32, %c0_i32_0 : i32, i32
  }
  func.func @transform_4(%arg0: i32) -> (i32, i32) {
    %c0_i32 = arith.constant 0 : i32
    %c0_i32_0 = arith.constant 0 : i32
    %c0_i32_1 = arith.constant 0 : i32
    return %c0_i32, %c0_i32_0 : i32, i32
  }
  func.func @transform_5(%arg0: i32) -> (i32, i32) {
    %c0_i32 = arith.constant 0 : i32
    %c0_i32_0 = arith.constant 0 : i32
    %c0_i32_1 = arith.constant 0 : i32
    return %c0_i32, %c0_i32_0 : i32, i32
  }
  func.func @transform_6(%arg0: i32) -> (i32, i32) {
    %c0_i32 = arith.constant 0 : i32
    %c0_i32_0 = arith.constant 0 : i32
    %c0_i32_1 = arith.constant 0 : i32
    return %c0_i32, %c0_i32_0 : i32, i32
  }
  func.func @transform_7(%arg0: i32) -> (i32, i32) {
    %c0_i32 = arith.constant 0 : i32
    %c0_i32_0 = arith.constant 0 : i32
    return %c0_i32, %arg0 : i32, i32
  }
}

</mosaic_0001>

<llo_original>
// kernel: tpu_custom_call.1
$region0: #{tpu_custom_call.1}
  #allocation0 [shape = 'u32[]', space=smem, size = 0x4, offset = 0x4, fixed_abs, tag = 'smem constant byte address 0x4 - core index']
  #allocation1 [shape = 'u32[144,128]{1,0:T(1,128)}', space=vmem, size = 0x12000, scoped, tag = 'internal scratch']
  #allocation2 [shape = 'f32[1,1]{1,0:T(1,128)S(6)}', space=smem, size = 0x200, scoped, tag = 'scoped memory for tpu_custom_call.1']
  %s0 = inlined_call_operand.vmem [shape: f32[32,128], index: 0, kind: input, shape index: {}]
  %s1 = inlined_call_operand.vmem [shape: f32[128,32], index: 1, kind: input, shape index: {}]
  %s2 = inlined_call_operand.vmem [shape: f32[128,1], index: 2, kind: input, shape index: {}]
  %s3 = inlined_call_operand.vmem [shape: f32[128,128], index: 3, kind: input, shape index: {}]
  %s4 = inlined_call_operand.vmem [shape: f32[128,1], index: 4, kind: input, shape index: {}]
  %s5 = inlined_call_operand.vmem [shape: f32[128,1], index: 5, kind: input, shape index: {}]
  %s6 = inlined_call_operand.<no memory space> [shape: f32[1,1], index: 6, kind: input, shape index: {}]
  %s7 = inlined_call_operand.hbm [shape: f32[1,128], index: 7, kind: output, shape index: {}]
  %s8 = sld [smem:[#allocation0]]
  $region38: #{tpu_custom_call.1} parent=0
    _
  %s10 = ssub.s32 1, %s8
  %s11 = scalar_select 0, %s10, %s8
  %12 = sst [smem:[#allocation2]] %s6
  $region1: #{tpu_custom_call.1} parent=0
    #allocation3 [shape = 'u8[512]{0}', space=vmem, size = 0x400, scoped, tag = 'output window, operand 0, single buffered']
    #allocation4 [shape = 's32[1]{0}', space=sflag, size = 0x4, scoped, tag = 'scoped memory for tpu_custom_call.1']
    %13 = vsyncpa [#allocation4], 0
    // Predicated region
    $region2: #{tpu_custom_call.1} parent=1 // pred_check
      _
    $region3: #{tpu_custom_call.1} parent=1 // pred_check_branch
      %15 = sbr.rel (0) target = $region5
    $region4: #{tpu_custom_call.1} parent=1 // pred_region
      _
    $region5: #{tpu_custom_call.1} parent=1 // pred_fallthru
      _
    // Predicated region
    $region6: #{tpu_custom_call.1} parent=1 // pred_check
      _
    $region7: #{tpu_custom_call.1} parent=1 // pred_check_branch
      %17 = sbr.rel (0) target = $region9
    $region8: #{tpu_custom_call.1} parent=1 // pred_region
      _
    $region9: #{tpu_custom_call.1} parent=1 // pred_fallthru
      _
    // Predicated region
    $region10: #{tpu_custom_call.1} parent=1 // pred_check
      _
    $region11: #{tpu_custom_call.1} parent=1 // pred_check_branch
      %19 = sbr.rel (0) target = $region13
    $region12: #{tpu_custom_call.1} parent=1 // pred_region
      _
    $region13: #{tpu_custom_call.1} parent=1 // pred_fallthru
      _
    // Predicated region
    $region14: #{tpu_custom_call.1} parent=1 // pred_check
      _
    $region15: #{tpu_custom_call.1} parent=1 // pred_check_branch
      %21 = sbr.rel (0) target = $region17
    $region16: #{tpu_custom_call.1} parent=1 // pred_region
      _
    $region17: #{tpu_custom_call.1} parent=1 // pred_fallthru
      _
    // Predicated region
    $region18: #{tpu_custom_call.1} parent=1 // pred_check
      _
    $region19: #{tpu_custom_call.1} parent=1 // pred_check_branch
      %23 = sbr.rel (0) target = $region21
    $region20: #{tpu_custom_call.1} parent=1 // pred_region
      _
    $region21: #{tpu_custom_call.1} parent=1 // pred_fallthru
      _
    // Predicated region
    $region22: #{tpu_custom_call.1} parent=1 // pred_check
      _
    $region23: #{tpu_custom_call.1} parent=1 // pred_check_branch
      %25 = sbr.rel (0) target = $region25
    $region24: #{tpu_custom_call.1} parent=1 // pred_region
      _
    $region25: #{tpu_custom_call.1} parent=1 // pred_fallthru
      _
    // Predicated region
    $region26: #{tpu_custom_call.1} parent=1 // pred_check
      _
    $region27: #{tpu_custom_call.1} parent=1 // pred_check_branch
      %27 = sbr.rel (0) target = $region29
    $region28: #{tpu_custom_call.1} parent=1 // pred_region
      _
    $region29: #{tpu_custom_call.1} parent=1 // pred_fallthru
      _
    %v29 = vld [vmem:[%s0] sm:$0xff]
    %v30 = vld [vmem:[%s0 + $0x8] sm:$0xff]
    %v31 = vld [vmem:[%s0 + $0x10] sm:$0xff]
    %v32 = vld [vmem:[%s0 + $0x18] sm:$0xff]
    %v33 = vpack.c.bf16 %v30, %v29
    %v34 = vpack.c.bf16 %v32, %v31
    %v35 = vld [vmem:[%s1] sm:$0xff]
    %v36 = vld [vmem:[%s1 + $0x8] sm:$0xff]
    %v37 = vld [vmem:[%s1 + $0x10] sm:$0xff]
    %v38 = vld [vmem:[%s1 + $0x18] sm:$0xff]
    %v39 = vld [vmem:[%s1 + $0x20] sm:$0xff]
    %v40 = vld [vmem:[%s1 + $0x28] sm:$0xff]
    %v41 = vld [vmem:[%s1 + $0x30] sm:$0xff]
    %v42 = vld [vmem:[%s1 + $0x38] sm:$0xff]
    %v43 = vld [vmem:[%s1 + $0x40] sm:$0xff]
    %v44 = vld [vmem:[%s1 + $0x48] sm:$0xff]
    %v45 = vld [vmem:[%s1 + $0x50] sm:$0xff]
    %v46 = vld [vmem:[%s1 + $0x58] sm:$0xff]
    %v47 = vld [vmem:[%s1 + $0x60] sm:$0xff]
    %v48 = vld [vmem:[%s1 + $0x68] sm:$0xff]
    %v49 = vld [vmem:[%s1 + $0x70] sm:$0xff]
    %v50 = vld [vmem:[%s1 + $0x78] sm:$0xff]
    %v51 = vpack.c.bf16 %v36, %v35
    %v52 = vpack.c.bf16 %v38, %v37
    %v53 = vpack.c.bf16 %v40, %v39
    %v54 = vpack.c.bf16 %v42, %v41
    %v55 = vpack.c.bf16 %v44, %v43
    %v56 = vpack.c.bf16 %v46, %v45
    %v57 = vpack.c.bf16 %v48, %v47
    %v58 = vpack.c.bf16 %v50, %v49
    %v59 = vld [vmem:[%s2] sm:$0xff]
    %v60 = vld [vmem:[%s2 + $0x8] sm:$0xff]
    %v61 = vld [vmem:[%s2 + $0x10] sm:$0xff]
    %v62 = vld [vmem:[%s2 + $0x18] sm:$0xff]
    %v63 = vld [vmem:[%s2 + $0x20] sm:$0xff]
    %v64 = vld [vmem:[%s2 + $0x28] sm:$0xff]
    %v65 = vld [vmem:[%s2 + $0x30] sm:$0xff]
    %v66 = vld [vmem:[%s2 + $0x38] sm:$0xff]
    %v67 = vld [vmem:[%s2 + $0x40] sm:$0xff]
    %v68 = vld [vmem:[%s2 + $0x48] sm:$0xff]
    %v69 = vld [vmem:[%s2 + $0x50] sm:$0xff]
    %v70 = vld [vmem:[%s2 + $0x58] sm:$0xff]
    %v71 = vld [vmem:[%s2 + $0x60] sm:$0xff]
    %v72 = vld [vmem:[%s2 + $0x68] sm:$0xff]
    %v73 = vld [vmem:[%s2 + $0x70] sm:$0xff]
    %v74 = vld [vmem:[%s2 + $0x78] sm:$0xff]
    %76 = vset.pattern.permute.xlu0 0
    %77 = vperm.xlu0 %76, %v59
    %v78 = vpop.permute.xlu0 %77
    %81 = vset.pattern.permute.xlu0 0
    %82 = vperm.xlu0 %81, %v60
    %v83 = vpop.permute.xlu0 %82
    %86 = vset.pattern.permute.xlu0 0
    %87 = vperm.xlu0 %86, %v61
    %v88 = vpop.permute.xlu0 %87
    %91 = vset.pattern.permute.xlu0 0
    %92 = vperm.xlu0 %91, %v62
    %v93 = vpop.permute.xlu0 %92
    %96 = vset.pattern.permute.xlu0 0
    %97 = vperm.xlu0 %96, %v63
    %v98 = vpop.permute.xlu0 %97
    %101 = vset.pattern.permute.xlu0 0
    %102 = vperm.xlu0 %101, %v64
    %v103 = vpop.permute.xlu0 %102
    %106 = vset.pattern.permute.xlu0 0
    %107 = vperm.xlu0 %106, %v65
    %v108 = vpop.permute.xlu0 %107
    %111 = vset.pattern.permute.xlu0 0
    %112 = vperm.xlu0 %111, %v66
    %v113 = vpop.permute.xlu0 %112
    %116 = vset.pattern.permute.xlu0 0
    %117 = vperm.xlu0 %116, %v67
    %v118 = vpop.permute.xlu0 %117
    %121 = vset.pattern.permute.xlu0 0
    %122 = vperm.xlu0 %121, %v68
    %v123 = vpop.permute.xlu0 %122
    %126 = vset.pattern.permute.xlu0 0
    %127 = vperm.xlu0 %126, %v69
    %v128 = vpop.permute.xlu0 %127
    %131 = vset.pattern.permute.xlu0 0
    %132 = vperm.xlu0 %131, %v70
    %v133 = vpop.permute.xlu0 %132
    %136 = vset.pattern.permute.xlu0 0
    %137 = vperm.xlu0 %136, %v71
    %v138 = vpop.permute.xlu0 %137
    %141 = vset.pattern.permute.xlu0 0
    %142 = vperm.xlu0 %141, %v72
    %v143 = vpop.permute.xlu0 %142
    %146 = vset.pattern.permute.xlu0 0
    %147 = vperm.xlu0 %146, %v73
    %v148 = vpop.permute.xlu0 %147
    %151 = vset.pattern.permute.xlu0 0
    %152 = vperm.xlu0 %151, %v74
    %v153 = vpop.permute.xlu0 %152
    %vm155 = vcmask 261120
    %v157 = vsel %vm155, %v51, 0
    %v160 = vsel %vm155, %v52, 0
    %v163 = vsel %vm155, %v53, 0
    %v166 = vsel %vm155, %v54, 0
    %v169 = vsel %vm155, %v55, 0
    %v172 = vsel %vm155, %v56, 0
    %v175 = vsel %vm155, %v57, 0
    %v178 = vsel %vm155, %v58, 0
    %180 = vmatprep.subr.bf16.mxu0 0
    %181 = vmatpush1.bf16.msra.mxu0 0
    %182 = vmatprep.subr.bf16.mxu0 0
    %183 = vmatpush1.bf16.msra.mxu0 0
    %184 = vmatprep.subr.bf16.mxu0 0
    %185 = vmatpush1.bf16.msra.mxu0 0
    %186 = vmatprep.subr.bf16.mxu0 0
    %187 = vmatpush1.bf16.msra.mxu0 0
    %188 = vmatprep.subr.bf16.mxu0 0
    %189 = vmatpush1.bf16.msra.mxu0 0
    %190 = vmatprep.subr.bf16.mxu0 0
    %191 = vmatpush1.bf16.msra.mxu0 0
    %192 = vmatprep.subr.bf16.mxu0 0
    %193 = vmatpush1.bf16.msra.mxu0 %v34
    %194 = vmatprep.subr.bf16.mxu0 0
    %195 = vmatpush1.bf16.msra.mxu0 %v33
    %196 = vmatprep.subr.bf16.mxu0 0
    %197 = vmatpush2.bf16.msra.mxu0 0
    %198 = vmatprep.subr.bf16.mxu0 0
    %199 = vmatpush2.bf16.msra.mxu0 0
    %200 = vmatprep.subr.bf16.mxu0 0
    %201 = vmatpush2.bf16.msra.mxu0 0
    %202 = vmatprep.subr.bf16.mxu0 0
    %203 = vmatpush2.bf16.msra.mxu0 0
    %204 = vmatprep.subr.bf16.mxu0 0
    %205 = vmatpush2.bf16.msra.mxu0 0
    %206 = vmatprep.subr.bf16.mxu0 0
    %207 = vmatpush2.bf16.msra.mxu0 0
    %208 = vmatprep.subr.bf16.mxu0 0
    %209 = vmatpush2.bf16.msra.mxu0 0
    %210 = vmatprep.subr.bf16.mxu0 0
    %211 = vmatpush2.bf16.msra.mxu0 0
    %212 = vmatprep.mubr.bf16.mxu0 0
    %213 = vmatmul.mubr.bf16.gmra.mxu0 %v157
    %v214 = vpop.f32.mrf.mxu0
    %v215 = vadd.f32 %v78, %v214
    %v216 = vpop.f32.mrf.mxu0
    %v217 = vpop.f32.mrf.mxu0
    %v218 = vadd.f32 %v83, %v217
    %v219 = vpop.f32.mrf.mxu0
    %220 = vmatprep.mubr.bf16.mxu0 0
    %221 = vmatmul.mubr.bf16.gmra.mxu0 %v160
    %v222 = vpop.f32.mrf.mxu0
    %v223 = vadd.f32 %v88, %v222
    %v224 = vpop.f32.mrf.mxu0
    %v225 = vpop.f32.mrf.mxu0
    %v226 = vadd.f32 %v93, %v225
    %v227 = vpop.f32.mrf.mxu0
    %228 = vmatprep.mubr.bf16.mxu0 0
    %229 = vmatmul.mubr.bf16.gmra.mxu0 %v163
    %v230 = vpop.f32.mrf.mxu0
    %v231 = vadd.f32 %v98, %v230
    %v232 = vpop.f32.mrf.mxu0
    %v233 = vpop.f32.mrf.mxu0
    %v234 = vadd.f32 %v103, %v233
    %v235 = vpop.f32.mrf.mxu0
    %236 = vmatprep.mubr.bf16.mxu0 0
    %237 = vmatmul.mubr.bf16.gmra.mxu0 %v166
    %v238 = vpop.f32.mrf.mxu0
    %v239 = vadd.f32 %v108, %v238
    %v240 = vpop.f32.mrf.mxu0
    %v241 = vpop.f32.mrf.mxu0
    %v242 = vadd.f32 %v113, %v241
    %v243 = vpop.f32.mrf.mxu0
    %244 = vmatprep.mubr.bf16.mxu0 0
    %245 = vmatmul.mubr.bf16.gmra.mxu0 %v169
    %v246 = vpop.f32.mrf.mxu0
    %v247 = vadd.f32 %v118, %v246
    %v248 = vpop.f32.mrf.mxu0
    %v249 = vpop.f32.mrf.mxu0
    %v250 = vadd.f32 %v123, %v249
    %v251 = vpop.f32.mrf.mxu0
    %252 = vmatprep.mubr.bf16.mxu0 0
    %253 = vmatmul.mubr.bf16.gmra.mxu0 %v172
    %v254 = vpop.f32.mrf.mxu0
    %v255 = vadd.f32 %v128, %v254
    %v256 = vpop.f32.mrf.mxu0
    %v257 = vpop.f32.mrf.mxu0
    %v258 = vadd.f32 %v133, %v257
    %v259 = vpop.f32.mrf.mxu0
    %260 = vmatprep.mubr.bf16.mxu0 0
    %261 = vmatmul.mubr.bf16.gmra.mxu0 %v175
    %v262 = vpop.f32.mrf.mxu0
    %v263 = vadd.f32 %v138, %v262
    %v264 = vpop.f32.mrf.mxu0
    %v265 = vpop.f32.mrf.mxu0
    %v266 = vadd.f32 %v143, %v265
    %v267 = vpop.f32.mrf.mxu0
    %268 = vmatprep.mubr.bf16.mxu0 0
    %269 = vmatmul.mubr.bf16.gmra.mxu0 %v178
    %v270 = vpop.f32.mrf.mxu0
    %v271 = vadd.f32 %v148, %v270
    %v272 = vpop.f32.mrf.mxu0
    %v273 = vpop.f32.mrf.mxu0
    %v274 = vadd.f32 %v153, %v273
    %v275 = vpop.f32.mrf.mxu0
    %276 = vdwg.mxu0
    %v277 = vmax.f32 %v215, 0.0
    %v278 = vmax.f32 %v218, 0.0
    %v279 = vmax.f32 %v223, 0.0
    %v280 = vmax.f32 %v226, 0.0
    %v281 = vmax.f32 %v231, 0.0
    %v282 = vmax.f32 %v234, 0.0
    %v283 = vmax.f32 %v239, 0.0
    %v284 = vmax.f32 %v242, 0.0
    %v285 = vmax.f32 %v247, 0.0
    %v286 = vmax.f32 %v250, 0.0
    %v287 = vmax.f32 %v255, 0.0
    %v288 = vmax.f32 %v258, 0.0
    %v289 = vmax.f32 %v263, 0.0
    %v290 = vmax.f32 %v266, 0.0
    %v291 = vmax.f32 %v271, 0.0
    %v292 = vmax.f32 %v274, 0.0
    %v293 = vld [vmem:[%s3] sm:$0xff]
    %v294 = vld [vmem:[%s3 + $0x8] sm:$0xff]
    %v295 = vld [vmem:[%s3 + $0x10] sm:$0xff]
    %v296 = vld [vmem:[%s3 + $0x18] sm:$0xff]
    %v297 = vld [vmem:[%s3 + $0x20] sm:$0xff]
    %v298 = vld [vmem:[%s3 + $0x28] sm:$0xff]
    %v299 = vld [vmem:[%s3 + $0x30] sm:$0xff]
    %v300 = vld [vmem:[%s3 + $0x38] sm:$0xff]
    %v301 = vld [vmem:[%s3 + $0x40] sm:$0xff]
    %v302 = vld [vmem:[%s3 + $0x48] sm:$0xff]
    %v303 = vld [vmem:[%s3 + $0x50] sm:$0xff]
    %v304 = vld [vmem:[%s3 + $0x58] sm:$0xff]
    %v305 = vld [vmem:[%s3 + $0x60] sm:$0xff]
    %v306 = vld [vmem:[%s3 + $0x68] sm:$0xff]
    %v307 = vld [vmem:[%s3 + $0x70] sm:$0xff]
    %v308 = vld [vmem:[%s3 + $0x78] sm:$0xff]
    %v309 = vpack.c.bf16 %v294, %v293
    %v310 = vpack.c.bf16 %v296, %v295
    %v311 = vpack.c.bf16 %v298, %v297
    %v312 = vpack.c.bf16 %v300, %v299
    %v313 = vpack.c.bf16 %v302, %v301
    %v314 = vpack.c.bf16 %v304, %v303
    %v315 = vpack.c.bf16 %v306, %v305
    %v316 = vpack.c.bf16 %v308, %v307
    %v317 = vpack.c.bf16 %v278, %v277
    %v318 = vpack.c.bf16 %v280, %v279
    %v319 = vpack.c.bf16 %v282, %v281
    %v320 = vpack.c.bf16 %v284, %v283
    %v321 = vpack.c.bf16 %v286, %v285
    %v322 = vpack.c.bf16 %v288, %v287
    %v323 = vpack.c.bf16 %v290, %v289
    %v324 = vpack.c.bf16 %v292, %v291
    %v325 = vld [vmem:[%s4] sm:$0xff]
    %v326 = vld [vmem:[%s4 + $0x8] sm:$0xff]
    %v327 = vld [vmem:[%s4 + $0x10] sm:$0xff]
    %v328 = vld [vmem:[%s4 + $0x18] sm:$0xff]
    %v329 = vld [vmem:[%s4 + $0x20] sm:$0xff]
    %v330 = vld [vmem:[%s4 + $0x28] sm:$0xff]
    %v331 = vld [vmem:[%s4 + $0x30] sm:$0xff]
    %v332 = vld [vmem:[%s4 + $0x38] sm:$0xff]
    %v333 = vld [vmem:[%s4 + $0x40] sm:$0xff]
    %v334 = vld [vmem:[%s4 + $0x48] sm:$0xff]
    %v335 = vld [vmem:[%s4 + $0x50] sm:$0xff]
    %v336 = vld [vmem:[%s4 + $0x58] sm:$0xff]
    %v337 = vld [vmem:[%s4 + $0x60] sm:$0xff]
    %v338 = vld [vmem:[%s4 + $0x68] sm:$0xff]
    %v339 = vld [vmem:[%s4 + $0x70] sm:$0xff]
    %v340 = vld [vmem:[%s4 + $0x78] sm:$0xff]
    %342 = vset.pattern.permute.xlu0 0
    %343 = vperm.xlu0 %342, %v325
    %v344 = vpop.permute.xlu0 %343
    %347 = vset.pattern.permute.xlu0 0
    %348 = vperm.xlu0 %347, %v326
    %v349 = vpop.permute.xlu0 %348
    %352 = vset.pattern.permute.xlu0 0
    %353 = vperm.xlu0 %352, %v327
    %v354 = vpop.permute.xlu0 %353
    %357 = vset.pattern.permute.xlu0 0
    %358 = vperm.xlu0 %357, %v328
    %v359 = vpop.permute.xlu0 %358
    %362 = vset.pattern.permute.xlu0 0
    %363 = vperm.xlu0 %362, %v329
    %v364 = vpop.permute.xlu0 %363
    %367 = vset.pattern.permute.xlu0 0
    %368 = vperm.xlu0 %367, %v330
    %v369 = vpop.permute.xlu0 %368
    %372 = vset.pattern.permute.xlu0 0
    %373 = vperm.xlu0 %372, %v331
    %v374 = vpop.permute.xlu0 %373
    %377 = vset.pattern.permute.xlu0 0
    %378 = vperm.xlu0 %377, %v332
    %v379 = vpop.permute.xlu0 %378
    %382 = vset.pattern.permute.xlu0 0
    %383 = vperm.xlu0 %382, %v333
    %v384 = vpop.permute.xlu0 %383
    %387 = vset.pattern.permute.xlu0 0
    %388 = vperm.xlu0 %387, %v334
    %v389 = vpop.permute.xlu0 %388
    %392 = vset.pattern.permute.xlu0 0
    %393 = vperm.xlu0 %392, %v335
    %v394 = vpop.permute.xlu0 %393
    %397 = vset.pattern.permute.xlu0 0
    %398 = vperm.xlu0 %397, %v336
    %v399 = vpop.permute.xlu0 %398
    %402 = vset.pattern.permute.xlu0 0
    %403 = vperm.xlu0 %402, %v337
    %v404 = vpop.permute.xlu0 %403
    %407 = vset.pattern.permute.xlu0 0
    %408 = vperm.xlu0 %407, %v338
    %v409 = vpop.permute.xlu0 %408
    %412 = vset.pattern.permute.xlu0 0
    %413 = vperm.xlu0 %412, %v339
    %v414 = vpop.permute.xlu0 %413
    %417 = vset.pattern.permute.xlu0 0
    %418 = vperm.xlu0 %417, %v340
    %v419 = vpop.permute.xlu0 %418
    %421 = vmatprep.subr.bf16.mxu0 0
    %422 = vmatpush1.bf16.msra.mxu0 %v324
    %423 = vmatprep.subr.bf16.mxu0 0
    %424 = vmatpush1.bf16.msra.mxu0 %v323
    %425 = vmatprep.subr.bf16.mxu0 0
    %426 = vmatpush1.bf16.msra.mxu0 %v322
    %427 = vmatprep.subr.bf16.mxu0 0
    %428 = vmatpush1.bf16.msra.mxu0 %v321
    %429 = vmatprep.subr.bf16.mxu0 0
    %430 = vmatpush1.bf16.msra.mxu0 %v320
    %431 = vmatprep.subr.bf16.mxu0 0
    %432 = vmatpush1.bf16.msra.mxu0 %v319
    %433 = vmatprep.subr.bf16.mxu0 0
    %434 = vmatpush1.bf16.msra.mxu0 %v318
    %435 = vmatprep.subr.bf16.mxu0 0
    %436 = vmatpush1.bf16.msra.mxu0 %v317
    %437 = vmatprep.subr.bf16.mxu0 0
    %438 = vmatpush2.bf16.msra.mxu0 0
    %439 = vmatprep.subr.bf16.mxu0 0
    %440 = vmatpush2.bf16.msra.mxu0 0
    %441 = vmatprep.subr.bf16.mxu0 0
    %442 = vmatpush2.bf16.msra.mxu0 0
    %443 = vmatprep.subr.bf16.mxu0 0
    %444 = vmatpush2.bf16.msra.mxu0 0
    %445 = vmatprep.subr.bf16.mxu0 0
    %446 = vmatpush2.bf16.msra.mxu0 0
    %447 = vmatprep.subr.bf16.mxu0 0
    %448 = vmatpush2.bf16.msra.mxu0 0
    %449 = vmatprep.subr.bf16.mxu0 0
    %450 = vmatpush2.bf16.msra.mxu0 0
    %451 = vmatprep.subr.bf16.mxu0 0
    %452 = vmatpush2.bf16.msra.mxu0 0
    %453 = vmatprep.mubr.bf16.mxu0 0
    %454 = vmatmul.mubr.bf16.gmra.mxu0 %v309
    %v455 = vpop.f32.mrf.mxu0
    %v456 = vadd.f32 %v344, %v455
    %v457 = vpop.f32.mrf.mxu0
    %v458 = vpop.f32.mrf.mxu0
    %v459 = vadd.f32 %v349, %v458
    %v460 = vpop.f32.mrf.mxu0
    %461 = vmatprep.mubr.bf16.mxu0 0
    %462 = vmatmul.mubr.bf16.gmra.mxu0 %v310
    %v463 = vpop.f32.mrf.mxu0
    %v464 = vadd.f32 %v354, %v463
    %v465 = vpop.f32.mrf.mxu0
    %v466 = vpop.f32.mrf.mxu0
    %v467 = vadd.f32 %v359, %v466
    %v468 = vpop.f32.mrf.mxu0
    %469 = vmatprep.mubr.bf16.mxu0 0
    %470 = vmatmul.mubr.bf16.gmra.mxu0 %v311
    %v471 = vpop.f32.mrf.mxu0
    %v472 = vadd.f32 %v364, %v471
    %v473 = vpop.f32.mrf.mxu0
    %v474 = vpop.f32.mrf.mxu0
    %v475 = vadd.f32 %v369, %v474
    %v476 = vpop.f32.mrf.mxu0
    %477 = vmatprep.mubr.bf16.mxu0 0
    %478 = vmatmul.mubr.bf16.gmra.mxu0 %v312
    %v479 = vpop.f32.mrf.mxu0
    %v480 = vadd.f32 %v374, %v479
    %v481 = vpop.f32.mrf.mxu0
    %v482 = vpop.f32.mrf.mxu0
    %v483 = vadd.f32 %v379, %v482
    %v484 = vpop.f32.mrf.mxu0
    %485 = vmatprep.mubr.bf16.mxu0 0
    %486 = vmatmul.mubr.bf16.gmra.mxu0 %v313
    %v487 = vpop.f32.mrf.mxu0
    %v488 = vadd.f32 %v384, %v487
    %v489 = vpop.f32.mrf.mxu0
    %v490 = vpop.f32.mrf.mxu0
    %v491 = vadd.f32 %v389, %v490
    %v492 = vpop.f32.mrf.mxu0
    %493 = vmatprep.mubr.bf16.mxu0 0
    %494 = vmatmul.mubr.bf16.gmra.mxu0 %v314
    %v495 = vpop.f32.mrf.mxu0
    %v496 = vadd.f32 %v394, %v495
    %v497 = vpop.f32.mrf.mxu0
    %v498 = vpop.f32.mrf.mxu0
    %v499 = vadd.f32 %v399, %v498
    %v500 = vpop.f32.mrf.mxu0
    %501 = vmatprep.mubr.bf16.mxu0 0
    %502 = vmatmul.mubr.bf16.gmra.mxu0 %v315
    %v503 = vpop.f32.mrf.mxu0
    %v504 = vadd.f32 %v404, %v503
    %v505 = vpop.f32.mrf.mxu0
    %v506 = vpop.f32.mrf.mxu0
    %v507 = vadd.f32 %v409, %v506
    %v508 = vpop.f32.mrf.mxu0
    %509 = vmatprep.mubr.bf16.mxu0 0
    %510 = vmatmul.mubr.bf16.gmra.mxu0 %v316
    %v511 = vpop.f32.mrf.mxu0
    %v512 = vadd.f32 %v414, %v511
    %v513 = vpop.f32.mrf.mxu0
    %v514 = vpop.f32.mrf.mxu0
    %v515 = vadd.f32 %v419, %v514
    %v516 = vpop.f32.mrf.mxu0
    %517 = vdwg.mxu0
    %v518 = vmax.f32 %v456, 0.0
    %v519 = vmax.f32 %v459, 0.0
    %v520 = vmax.f32 %v464, 0.0
    %v521 = vmax.f32 %v467, 0.0
    %v522 = vmax.f32 %v472, 0.0
    %v523 = vmax.f32 %v475, 0.0
    %v524 = vmax.f32 %v480, 0.0
    %v525 = vmax.f32 %v483, 0.0
    %v526 = vmax.f32 %v488, 0.0
    %v527 = vmax.f32 %v491, 0.0
    %v528 = vmax.f32 %v496, 0.0
    %v529 = vmax.f32 %v499, 0.0
    %v530 = vmax.f32 %v504, 0.0
    %v531 = vmax.f32 %v507, 0.0
    %v532 = vmax.f32 %v512, 0.0
    %v533 = vmax.f32 %v515, 0.0
    %v534 = vld [vmem:[%s5] sm:$0xff]
    %v535 = vld [vmem:[%s5 + $0x8] sm:$0xff]
    %v536 = vld [vmem:[%s5 + $0x10] sm:$0xff]
    %v537 = vld [vmem:[%s5 + $0x18] sm:$0xff]
    %v538 = vld [vmem:[%s5 + $0x20] sm:$0xff]
    %v539 = vld [vmem:[%s5 + $0x28] sm:$0xff]
    %v540 = vld [vmem:[%s5 + $0x30] sm:$0xff]
    %v541 = vld [vmem:[%s5 + $0x38] sm:$0xff]
    %v542 = vld [vmem:[%s5 + $0x40] sm:$0xff]
    %v543 = vld [vmem:[%s5 + $0x48] sm:$0xff]
    %v544 = vld [vmem:[%s5 + $0x50] sm:$0xff]
    %v545 = vld [vmem:[%s5 + $0x58] sm:$0xff]
    %v546 = vld [vmem:[%s5 + $0x60] sm:$0xff]
    %v547 = vld [vmem:[%s5 + $0x68] sm:$0xff]
    %v548 = vld [vmem:[%s5 + $0x70] sm:$0xff]
    %v549 = vld [vmem:[%s5 + $0x78] sm:$0xff]
    %551 = vset.pattern.permute.xlu0 0
    %552 = vperm.xlu0 %551, %v534
    %v553 = vpop.permute.xlu0 %552
    %556 = vset.pattern.permute.xlu0 0
    %557 = vperm.xlu0 %556, %v535
    %v558 = vpop.permute.xlu0 %557
    %561 = vset.pattern.permute.xlu0 0
    %562 = vperm.xlu0 %561, %v536
    %v563 = vpop.permute.xlu0 %562
    %566 = vset.pattern.permute.xlu0 0
    %567 = vperm.xlu0 %566, %v537
    %v568 = vpop.permute.xlu0 %567
    %571 = vset.pattern.permute.xlu0 0
    %572 = vperm.xlu0 %571, %v538
    %v573 = vpop.permute.xlu0 %572
    %576 = vset.pattern.permute.xlu0 0
    %577 = vperm.xlu0 %576, %v539
    %v578 = vpop.permute.xlu0 %577
    %581 = vset.pattern.permute.xlu0 0
    %582 = vperm.xlu0 %581, %v540
    %v583 = vpop.permute.xlu0 %582
    %586 = vset.pattern.permute.xlu0 0
    %587 = vperm.xlu0 %586, %v541
    %v588 = vpop.permute.xlu0 %587
    %591 = vset.pattern.permute.xlu0 0
    %592 = vperm.xlu0 %591, %v542
    %v593 = vpop.permute.xlu0 %592
    %596 = vset.pattern.permute.xlu0 0
    %597 = vperm.xlu0 %596, %v543
    %v598 = vpop.permute.xlu0 %597
    %601 = vset.pattern.permute.xlu0 0
    %602 = vperm.xlu0 %601, %v544
    %v603 = vpop.permute.xlu0 %602
    %606 = vset.pattern.permute.xlu0 0
    %607 = vperm.xlu0 %606, %v545
    %v608 = vpop.permute.xlu0 %607
    %611 = vset.pattern.permute.xlu0 0
    %612 = vperm.xlu0 %611, %v546
    %v613 = vpop.permute.xlu0 %612
    %616 = vset.pattern.permute.xlu0 0
    %617 = vperm.xlu0 %616, %v547
    %v618 = vpop.permute.xlu0 %617
    %621 = vset.pattern.permute.xlu0 0
    %622 = vperm.xlu0 %621, %v548
    %v623 = vpop.permute.xlu0 %622
    %626 = vset.pattern.permute.xlu0 0
    %627 = vperm.xlu0 %626, %v549
    %v628 = vpop.permute.xlu0 %627
    %v630 = vmul.f32 %v518, %v553
    %v631 = vmul.f32 %v519, %v558
    %v632 = vmul.f32 %v520, %v563
    %v633 = vmul.f32 %v521, %v568
    %v634 = vmul.f32 %v522, %v573
    %v635 = vmul.f32 %v523, %v578
    %v636 = vmul.f32 %v524, %v583
    %v637 = vmul.f32 %v525, %v588
    %v638 = vmul.f32 %v526, %v593
    %v639 = vmul.f32 %v527, %v598
    %v640 = vmul.f32 %v528, %v603
    %v641 = vmul.f32 %v529, %v608
    %v642 = vmul.f32 %v530, %v613
    %v643 = vmul.f32 %v531, %v618
    %v644 = vmul.f32 %v532, %v623
    %v645 = vmul.f32 %v533, %v628
    %v646 = vadd.f32 %v630, %v631
    %v647 = vadd.f32 %v646, %v632
    %v648 = vadd.f32 %v647, %v633
    %v649 = vadd.f32 %v648, %v634
    %v650 = vadd.f32 %v649, %v635
    %v651 = vadd.f32 %v650, %v636
    %v652 = vadd.f32 %v651, %v637
    %v653 = vadd.f32 %v652, %v638
    %v654 = vadd.f32 %v653, %v639
    %v655 = vadd.f32 %v654, %v640
    %v656 = vadd.f32 %v655, %v641
    %v657 = vadd.f32 %v656, %v642
    %v658 = vadd.f32 %v657, %v643
    %v659 = vadd.f32 %v658, %v644
    %v660 = vadd.f32 %v659, %v645
    %v661 = vrot.slane %v660, 4
    %v662 = vadd.f32 %v660, %v661
    %v663 = vrot.slane %v662, 2
    %v664 = vadd.f32 %v662, %v663
    %v665 = vrot.slane %v664, 1
    %v666 = vadd.f32 %v664, %v665
    %s667 = sld [smem:[#allocation2]]
    %v668 = vstv %s667
    %v669 = vadd.f32 %v666, %v668
    %670 = vst [vmem:[#allocation3] sm:$0x1] %v669
    // Predicated region
    $region30: #{tpu_custom_call.1} parent=1 // pred_check
      _
    $region31: #{tpu_custom_call.1} parent=1 // pred_check_branch
      %672 = sbr.rel (0) target = $region33
    $region32: #{tpu_custom_call.1} parent=1 // pred_region
      %s674 = ssub.s32 16, 16
      %675 = vsyncadd [#allocation4], %s674
      %s677 = sshll.u32 [#allocation3], 4
      %s678 = int_to_ptr.vmem [resolvable:$true] %s677
      %680 = dma.vmem_to_hbm [thread:$0]  %s678, 16, %s7, [#allocation4]
    $region33: #{tpu_custom_call.1} parent=1 // pred_fallthru
      _
    // Predicated region
    $region34: #{tpu_custom_call.1} parent=1 // pred_check
      _
    $region35: #{tpu_custom_call.1} parent=1 // pred_check_branch
      %682 = sbr.rel (0) target = $region37
    $region36: #{tpu_custom_call.1} parent=1 // pred_region
      %683 = dma.done [#allocation4], 16
    $region37: #{tpu_custom_call.1} parent=1 // pred_fallthru
      _
    %684 = vsyncpa [#allocation4], 1

</llo_original>
